<compile_context>
chip_gen: v6e
topology: v6e:2x2x1
jax: 0.10.0
libtpu: 0.0.40
codegen_flags: <defaults>
</compile_context>

<pallas_src>
import functools

import jax
import jax.numpy as jnp
import numpy as np
from jax import lax
from jax.experimental import pallas as pl
from jax.experimental.pallas import tpu as pltpu


# ----------------------------- Pallas kernel ------------------------------- #
def _crelu_kernel(x_ref, w_ref, shift_ref, o_ref, *, kh, kw, cin, wp, m):
    """One batch image per grid step (implicit GEMM over the kh*kw taps).

    x_ref:     (1, Cin, L)        zero-padded image, rows flattened (bf16)
    w_ref:     (Cout, kh*kw*Cin)  conv weight, BN scale folded, (kh,kw,Cin) order
    shift_ref: (Cout, 1)          folded BN shift = beta - mean*scale  (f32)
    o_ref:     (1, 2*Cout, m)     rows [0:Cout]=relu(y), [Cout:]=relu(-y); m=Ho*Wp
    """
    cout = w_ref.shape[0]
    xflat = x_ref[0]                                   # (Cin, L)  bf16
    w = w_ref[...]                                     # (Cout, K) bf16

    y = jnp.zeros((cout, m), dtype=jnp.float32)
    # Implicit GEMM: for stride=1 the patch block of tap (i, j) is the
    # contiguous lane slice xflat[:, i*Wp+j : i*Wp+j+m] of the row-flattened
    # padded image (gathered in VMEM, never materialized in HBM).
    for i in range(kh):
        for j in range(kw):
            off = i * wp + j
            k0 = (i * kw + j) * cin
            patch = xflat[:, off:off + m]              # (Cin, m)   lane slice
            w_ij = w[:, k0:k0 + cin]                   # (Cout, Cin)
            y = y + jnp.dot(w_ij, patch, preferred_element_type=jnp.float32)

    y = y + shift_ref[...]                             # lane-broadcast (Cout,1)
    # f32 epilogue (free VPU filler under the store bottleneck), then one
    # full-block bf16 store of the concatenated [relu(y); relu(-y)].
    out = jnp.concatenate([jnp.maximum(y, 0.0), jnp.maximum(-y, 0.0)], axis=0)
    o_ref[0] = out.astype(o_ref.dtype)


# ------------------------------ JAX wrapper -------------------------------- #
def crelu_forward(x_nchw, conv_w, gamma, beta, run_mean, run_var,
                  *, stride, padding, eps=1e-5,
                  compute_dtype=jnp.bfloat16, out_dtype=jnp.bfloat16):
    """CRelu forward. x_nchw: (N, Cin, H, W); conv_w: (Cout, Cin, kh, kw)."""
    N, Cin, H, W = x_nchw.shape
    Cout, _, kh, kw = conv_w.shape
    if stride != 1:
        # TODO(synk): stride>1 (FaceBoxes conv1/conv2) needs a strided-window
        # gather or an im2col fallback; only the stride=1 path is fused here.
        raise NotImplementedError("fused CRelu kernel only supports stride=1")

    Hp, Wp = H + 2 * padding, W + 2 * padding
    Ho, Wo = Hp - kh + 1, Wp - kw + 1          # stride = 1
    M = Ho * Wp                                # lane axis incl. kw-1 overlap cols/row
    K = kh * kw * Cin

    # Fold eval-mode BatchNorm: scale into the weight, shift stays additive.
    inv = gamma * lax.rsqrt(run_var + eps)                           # (Cout,)
    w_t = jnp.transpose(conv_w, (0, 2, 3, 1)).reshape(Cout, K)       # (kh,kw,Cin)
    w_scaled = (w_t * inv[:, None]).astype(compute_dtype)
    shift = (beta - run_mean * inv).reshape(Cout, 1).astype(jnp.float32)

    # Cast to bf16 first, zero-pad spatially, flatten rows, pad the lane axis
    # to a 128 multiple (>= Hp*Wp + kw - 1 so every shifted slice is in bounds).
    xb = x_nchw.astype(compute_dtype)
    xp = jnp.pad(xb, ((0, 0), (0, 0), (padding, padding), (padding, padding)))
    L = int(pl.cdiv(Hp * Wp + kw - 1, 128)) * 128
    xflat = jnp.pad(xp.reshape(N, Cin, Hp * Wp),
                    ((0, 0), (0, 0), (0, L - Hp * Wp)))

    kern = functools.partial(_crelu_kernel, kh=kh, kw=kw, cin=Cin, wp=Wp, m=M)

    in_isz = jnp.dtype(compute_dtype).itemsize
    out_isz = jnp.dtype(out_dtype).itemsize
    step_bytes = (Cin * L * in_isz + 2 * Cout * M * out_isz
                  + Cout * (K * in_isz + 4))
    # Generous headroom, capped at 48 MiB (v7x has 64 MiB physical per TC).
    vmem_limit = int(min(max(16 * step_bytes, 4 << 20), 48 << 20))

    out_flat = pl.pallas_call(
        kern,
        out_shape=jax.ShapeDtypeStruct((N, 2 * Cout, M), out_dtype),
        grid_spec=pltpu.PrefetchScalarGridSpec(
            num_scalar_prefetch=0,
            grid=(N,),
            in_specs=[
                pl.BlockSpec((1, Cin, L), lambda n: (n, 0, 0)),
                pl.BlockSpec((Cout, K), lambda n: (0, 0)),
                pl.BlockSpec((Cout, 1), lambda n: (0, 0)),
            ],
            out_specs=pl.BlockSpec((1, 2 * Cout, M), lambda n: (n, 0, 0)),
        ),
        compiler_params=pltpu.CompilerParams(
            dimension_semantics=("parallel",),
            vmem_limit_bytes=vmem_limit,
        ),
    )(xflat, w_scaled, shift)                                        # (N, 2C, M)

    # Batch is already the leading axis -> no transpose; just drop the kw-1
    # overlap columns per output row.
    return out_flat.reshape(N, 2 * Cout, Ho, Wp)[:, :, :, :Wo]       # (N,2C,Ho,Wo)


# ---------------------------- reference check ------------------------------ #
def _reference(x_nchw, conv_w, gamma, beta, run_mean, run_var,
               *, stride, padding, eps=1e-5):
    y = lax.conv_general_dilated(
        x_nchw, conv_w,
        window_strides=(stride, stride),
        padding=[(padding, padding), (padding, padding)],
        dimension_numbers=("NCHW", "OIHW", "NCHW"),
    )
    inv = gamma / jnp.sqrt(run_var + eps)
    y = y * inv[None, :, None, None] + (beta - run_mean * inv)[None, :, None, None]
    y = jnp.concatenate([y, -y], axis=1)
    return jnp.maximum(y, 0.0)


# --------------------------------- main ------------------------------------ #
if __name__ == "__main__":
    # Module config: CRelu(in_channels=4, out_channels=8, kernel_size=3,
    #                       stride=1, padding=1)
    N, Cin, H, W = 2, 4, 16, 16
    Cout, kh, kw = 8, 3, 3
    stride, padding = 1, 1

    key = jax.random.PRNGKey(0)
    k_x, k_w, k_g, k_b, k_m, k_v = jax.random.split(key, 6)

    x = jax.random.normal(k_x, (N, Cin, H, W), dtype=jnp.float32)
    conv_w = jax.random.normal(k_w, (Cout, Cin, kh, kw), dtype=jnp.float32) * 0.1
    gamma = 1.0 + 0.1 * jax.random.normal(k_g, (Cout,), dtype=jnp.float32)
    beta = 0.1 * jax.random.normal(k_b, (Cout,), dtype=jnp.float32)
    run_mean = 0.1 * jax.random.normal(k_m, (Cout,), dtype=jnp.float32)
    run_var = jnp.abs(jax.random.normal(k_v, (Cout,), dtype=jnp.float32)) + 0.5

    fwd = jax.jit(functools.partial(crelu_forward, stride=stride, padding=padding))
    out = fwd(x, conv_w, gamma, beta, run_mean, run_var)
    out = jax.block_until_ready(out)

    ref = _reference(x, conv_w, gamma, beta, run_mean, run_var,
                     stride=stride, padding=padding)
    assert out.shape == (N, 2 * Cout, H, W), out.shape
    # bf16 matmul operands + bf16 output with f32 accumulation -> conv-level tol.
    np.testing.assert_allclose(np.asarray(out, dtype=np.float32),
                               np.asarray(ref), rtol=3e-2, atol=3e-2)

    print("KERNEL_OK")
</pallas_src>

<mosaic_0001>
module attributes {stable_mosaic.version = 11 : i64} {
  func.func @_crelu_kernel(%arg0: i32, %arg1: memref<1x4x384xbf16, #tpu.memory_space<vmem>>, %arg2: memref<8x36xbf16, #tpu.memory_space<vmem>>, %arg3: memref<8x1xf32, #tpu.memory_space<vmem>>, %arg4: memref<1x16x288xbf16, #tpu.memory_space<vmem>>) attributes {dimension_semantics = [#tpu.dimension_semantics<parallel>], iteration_bounds = array<i64: 2>, scalar_prefetch = 0 : i64, scratch_operands = 0 : i64, tpu.core_type = #tpu.core_type<tc>, window_params = [{transform_indices = @transform_0, window_bounds = array<i64: 1, 4, 384>}, {pipeline_mode = #tpu.pipeline_mode<synchronous>, transform_indices = @transform_1, window_bounds = array<i64: 8, 36>}, {pipeline_mode = #tpu.pipeline_mode<synchronous>, transform_indices = @transform_2, window_bounds = array<i64: 8, 1>}, {transform_indices = @transform_3, window_bounds = array<i64: 1, 16, 288>}]} {
    %c0 = arith.constant 0 : index
    %c0_0 = arith.constant 0 : index
    %c0_1 = arith.constant 0 : index
    %0 = vector.load %arg1[%c0, %c0_0, %c0_1] : memref<1x4x384xbf16, #tpu.memory_space<vmem>>, vector<1x4x384xbf16>
    %1 = vector.shape_cast %0 : vector<1x4x384xbf16> to vector<4x384xbf16>
    %c0_2 = arith.constant 0 : index
    %c0_3 = arith.constant 0 : index
    %2 = vector.load %arg2[%c0_2, %c0_3] : memref<8x36xbf16, #tpu.memory_space<vmem>>, vector<8x36xbf16>
    %cst = arith.constant 0.000000e+00 : f32
    %3 = vector.broadcast %cst : f32 to vector<8x288xf32>
    %4 = vector.extract_strided_slice %1 {offsets = [0, 0], sizes = [4, 288], strides = [1, 1]} : vector<4x384xbf16> to vector<4x288xbf16>
    %5 = vector.extract_strided_slice %2 {offsets = [0, 0], sizes = [8, 4], strides = [1, 1]} : vector<8x36xbf16> to vector<8x4xbf16>
    %cst_4 = arith.constant dense<0.000000e+00> : vector<8x288xf32>
    %6 = tpu.matmul %5, %4, %cst_4 {dimension_numbers = #tpu.dot_dimension_numbers<[1], [0], [0], [1], [0, 0, 1, 1], [], []>} : vector<8x4xbf16>, vector<4x288xbf16>, vector<8x288xf32> -> vector<8x288xf32>
    %7 = arith.addf %3, %6 : vector<8x288xf32>
    %8 = vector.extract_strided_slice %1 {offsets = [0, 1], sizes = [4, 288], strides = [1, 1]} : vector<4x384xbf16> to vector<4x288xbf16>
    %9 = vector.extract_strided_slice %2 {offsets = [0, 4], sizes = [8, 4], strides = [1, 1]} : vector<8x36xbf16> to vector<8x4xbf16>
    %cst_5 = arith.constant dense<0.000000e+00> : vector<8x288xf32>
    %10 = tpu.matmul %9, %8, %cst_5 {dimension_numbers = #tpu.dot_dimension_numbers<[1], [0], [0], [1], [0, 0, 1, 1], [], []>} : vector<8x4xbf16>, vector<4x288xbf16>, vector<8x288xf32> -> vector<8x288xf32>
    %11 = arith.addf %7, %10 : vector<8x288xf32>
    %12 = vector.extract_strided_slice %1 {offsets = [0, 2], sizes = [4, 288], strides = [1, 1]} : vector<4x384xbf16> to vector<4x288xbf16>
    %13 = vector.extract_strided_slice %2 {offsets = [0, 8], sizes = [8, 4], strides = [1, 1]} : vector<8x36xbf16> to vector<8x4xbf16>
    %cst_6 = arith.constant dense<0.000000e+00> : vector<8x288xf32>
    %14 = tpu.matmul %13, %12, %cst_6 {dimension_numbers = #tpu.dot_dimension_numbers<[1], [0], [0], [1], [0, 0, 1, 1], [], []>} : vector<8x4xbf16>, vector<4x288xbf16>, vector<8x288xf32> -> vector<8x288xf32>
    %15 = arith.addf %11, %14 : vector<8x288xf32>
    %16 = vector.extract_strided_slice %1 {offsets = [0, 18], sizes = [4, 288], strides = [1, 1]} : vector<4x384xbf16> to vector<4x288xbf16>
    %17 = vector.extract_strided_slice %2 {offsets = [0, 12], sizes = [8, 4], strides = [1, 1]} : vector<8x36xbf16> to vector<8x4xbf16>
    %cst_7 = arith.constant dense<0.000000e+00> : vector<8x288xf32>
    %18 = tpu.matmul %17, %16, %cst_7 {dimension_numbers = #tpu.dot_dimension_numbers<[1], [0], [0], [1], [0, 0, 1, 1], [], []>} : vector<8x4xbf16>, vector<4x288xbf16>, vector<8x288xf32> -> vector<8x288xf32>
    %19 = arith.addf %15, %18 : vector<8x288xf32>
    %20 = vector.extract_strided_slice %1 {offsets = [0, 19], sizes = [4, 288], strides = [1, 1]} : vector<4x384xbf16> to vector<4x288xbf16>
    %21 = vector.extract_strided_slice %2 {offsets = [0, 16], sizes = [8, 4], strides = [1, 1]} : vector<8x36xbf16> to vector<8x4xbf16>
    %cst_8 = arith.constant dense<0.000000e+00> : vector<8x288xf32>
    %22 = tpu.matmul %21, %20, %cst_8 {dimension_numbers = #tpu.dot_dimension_numbers<[1], [0], [0], [1], [0, 0, 1, 1], [], []>} : vector<8x4xbf16>, vector<4x288xbf16>, vector<8x288xf32> -> vector<8x288xf32>
    %23 = arith.addf %19, %22 : vector<8x288xf32>
    %24 = vector.extract_strided_slice %1 {offsets = [0, 20], sizes = [4, 288], strides = [1, 1]} : vector<4x384xbf16> to vector<4x288xbf16>
    %25 = vector.extract_strided_slice %2 {offsets = [0, 20], sizes = [8, 4], strides = [1, 1]} : vector<8x36xbf16> to vector<8x4xbf16>
    %cst_9 = arith.constant dense<0.000000e+00> : vector<8x288xf32>
    %26 = tpu.matmul %25, %24, %cst_9 {dimension_numbers = #tpu.dot_dimension_numbers<[1], [0], [0], [1], [0, 0, 1, 1], [], []>} : vector<8x4xbf16>, vector<4x288xbf16>, vector<8x288xf32> -> vector<8x288xf32>
    %27 = arith.addf %23, %26 : vector<8x288xf32>
    %28 = vector.extract_strided_slice %1 {offsets = [0, 36], sizes = [4, 288], strides = [1, 1]} : vector<4x384xbf16> to vector<4x288xbf16>
    %29 = vector.extract_strided_slice %2 {offsets = [0, 24], sizes = [8, 4], strides = [1, 1]} : vector<8x36xbf16> to vector<8x4xbf16>
    %cst_10 = arith.constant dense<0.000000e+00> : vector<8x288xf32>
    %30 = tpu.matmul %29, %28, %cst_10 {dimension_numbers = #tpu.dot_dimension_numbers<[1], [0], [0], [1], [0, 0, 1, 1], [], []>} : vector<8x4xbf16>, vector<4x288xbf16>, vector<8x288xf32> -> vector<8x288xf32>
    %31 = arith.addf %27, %30 : vector<8x288xf32>
    %32 = vector.extract_strided_slice %1 {offsets = [0, 37], sizes = [4, 288], strides = [1, 1]} : vector<4x384xbf16> to vector<4x288xbf16>
    %33 = vector.extract_strided_slice %2 {offsets = [0, 28], sizes = [8, 4], strides = [1, 1]} : vector<8x36xbf16> to vector<8x4xbf16>
    %cst_11 = arith.constant dense<0.000000e+00> : vector<8x288xf32>
    %34 = tpu.matmul %33, %32, %cst_11 {dimension_numbers = #tpu.dot_dimension_numbers<[1], [0], [0], [1], [0, 0, 1, 1], [], []>} : vector<8x4xbf16>, vector<4x288xbf16>, vector<8x288xf32> -> vector<8x288xf32>
    %35 = arith.addf %31, %34 : vector<8x288xf32>
    %36 = vector.extract_strided_slice %1 {offsets = [0, 38], sizes = [4, 288], strides = [1, 1]} : vector<4x384xbf16> to vector<4x288xbf16>
    %37 = vector.extract_strided_slice %2 {offsets = [0, 32], sizes = [8, 4], strides = [1, 1]} : vector<8x36xbf16> to vector<8x4xbf16>
    %cst_12 = arith.constant dense<0.000000e+00> : vector<8x288xf32>
    %38 = tpu.matmul %37, %36, %cst_12 {dimension_numbers = #tpu.dot_dimension_numbers<[1], [0], [0], [1], [0, 0, 1, 1], [], []>} : vector<8x4xbf16>, vector<4x288xbf16>, vector<8x288xf32> -> vector<8x288xf32>
    %39 = arith.addf %35, %38 : vector<8x288xf32>
    %c0_13 = arith.constant 0 : index
    %c0_14 = arith.constant 0 : index
    %40 = vector.load %arg3[%c0_13, %c0_14] : memref<8x1xf32, #tpu.memory_space<vmem>>, vector<8x1xf32>
    %41 = vector.broadcast %40 : vector<8x1xf32> to vector<8x288xf32>
    %42 = arith.addf %39, %41 : vector<8x288xf32>
    %cst_15 = arith.constant 0.000000e+00 : f32
    %43 = vector.broadcast %cst_15 : f32 to vector<8x288xf32>
    %44 = arith.maximumf %42, %43 : vector<8x288xf32>
    %cst_16 = arith.constant 0.000000e+00 : f32
    %45 = vector.broadcast %cst_16 : f32 to vector<8x288xf32>
    %46 = arith.subf %45, %42 : vector<8x288xf32>
    %cst_17 = arith.constant 0.000000e+00 : f32
    %47 = vector.broadcast %cst_17 : f32 to vector<8x288xf32>
    %48 = arith.maximumf %46, %47 : vector<8x288xf32>
    %49 = tpu.concatenate %44, %48 in 0 : vector<8x288xf32>, vector<8x288xf32> -> vector<16x288xf32>
    %50 = arith.truncf %49 : vector<16x288xf32> to vector<16x288xbf16>
    %c0_18 = arith.constant 0 : index
    %c0_19 = arith.constant 0 : index
    %c0_20 = arith.constant 0 : index
    %51 = vector.load %arg4[%c0_18, %c0_19, %c0_20] : memref<1x16x288xbf16, #tpu.memory_space<vmem>>, vector<1x16x288xbf16>
    %52 = vector.shape_cast %51 : vector<1x16x288xbf16> to vector<16x288xbf16>
    %53 = vector.shape_cast %50 : vector<16x288xbf16> to vector<1x16x288xbf16>
    tpu.vector_store %arg4[%c0_18, %c0_19, %c0_20], %53 {strides = array<i32>} : memref<1x16x288xbf16, #tpu.memory_space<vmem>>, vector<1x16x288xbf16>,
    return
  }
  func.func @transform_0(%arg0: i32) -> (i32, i32, i32) {
    %c0_i32 = arith.constant 0 : i32
    %c0_i32_0 = arith.constant 0 : i32
    %c0_i32_1 = arith.constant 0 : i32
    return %arg0, %c0_i32, %c0_i32_0 : i32, i32, i32
  }
  func.func @transform_1(%arg0: i32) -> (i32, i32) {
    %c0_i32 = arith.constant 0 : i32
    %c0_i32_0 = arith.constant 0 : i32
    %c0_i32_1 = arith.constant 0 : i32
    return %c0_i32, %c0_i32_0 : i32, i32
  }
  func.func @transform_2(%arg0: i32) -> (i32, i32) {
    %c0_i32 = arith.constant 0 : i32
    %c0_i32_0 = arith.constant 0 : i32
    %c0_i32_1 = arith.constant 0 : i32
    return %c0_i32, %c0_i32_0 : i32, i32
  }
  func.func @transform_3(%arg0: i32) -> (i32, i32, i32) {
    %c0_i32 = arith.constant 0 : i32
    %c0_i32_0 = arith.constant 0 : i32
    %c0_i32_1 = arith.constant 0 : i32
    return %arg0, %c0_i32, %c0_i32_0 : i32, i32, i32
  }
}

</mosaic_0001>

<llo_original>
// kernel: crelu_forward.1
$region0: #{crelu_forward.1}
  #allocation0 [shape = 'u32[]', space=smem, size = 0x4, offset = 0x4, fixed_abs, tag = 'smem constant byte address 0x4 - core index']
  #allocation1 [shape = 'u32[144,128]{1,0:T(1,128)}', space=vmem, size = 0x12000, scoped, tag = 'internal scratch']
  %s0 = inlined_call_operand.vmem [shape: bf16[2,4,384], index: 0, kind: input, shape index: {}]
  %s1 = inlined_call_operand.vmem [shape: bf16[8,36], index: 1, kind: input, shape index: {}]
  %s2 = inlined_call_operand.vmem [shape: f32[8,1], index: 2, kind: input, shape index: {}]
  %s3 = inlined_call_operand.vmem [shape: bf16[2,16,288], index: 3, kind: output, shape index: {}]
  %s4 = sld [smem:[#allocation0]]
  $region45: #{crelu_forward.1} parent=0
    _
  %s6 = ssub.s32 1, %s4
  %s7 = scalar_select 0, %s6, %s4
  loop: start=0, step=1, limit=4
  $region2: #{crelu_forward.1} parent=0 // loop_pre_header
    _
  $region3: #{crelu_forward.1} parent=0 // loop_header
    %s9 = sphi 0, %s13
    %p10 = scmp.ge.s32.totalorder %s9, 4
    %s19 = sphi 0, %s21
    %s22 = sphi 0, %s19
    %s23 = sphi 0, %s22
    %s39 = sphi 0, %s23
    %s43 = sphi 0, %s43
    %s45 = sphi 0, %s43
    %s46 = sphi 0, %s45
    %s60 = sphi 0, %s46
    %s64 = sphi 0, %s64
    %s66 = sphi 0, %s64
    %s67 = sphi 0, %s66
    %s81 = sphi 0, %s67
    %s87 = sphi 0, %s89
    %s90 = sphi 0, %s87
    %s91 = sphi 0, %s90
    %s107 = sphi 0, %s91
  $region4: #{crelu_forward.1} parent=0 // loop_header_branch
    %12 = sbr.rel (%p10) target = $region8
  $region5: #{crelu_forward.1} parent=0 // loop_body
    %s14 = ssub.s32 %s9, 1
    %s15 = ssub.s32 %s9, 2
    %s16 = sadd.s32 %s9, 1
    %s17 = ssub.s32 %s9, %s16
    %p18 = scmp.eq.s32.totalorder %s17, 0
    %s20 = sadd.s32 %s19, 1
    %s21 = scalar_select %p18, %s19, %s20
    %p24 = pneg %p18
    %p25 = scmp.eq.s32.totalorder %s9, 1
    %p26 = por %p24, %p25
    %p27 = scmp.ne.s32.totalorder %s19, %s22
    %p28 = scmp.eq.s32.totalorder %s9, 0
    %p29 = por %p27, %p28
    %p30 = scmp.ne.s32.totalorder %s19, %s22
    %p31 = scmp.eq.s32.totalorder %s14, 1
    %p32 = por %p30, %p31
    %p33 = scmp.ne.s32.totalorder %s22, %s23
    %p34 = scmp.eq.s32.totalorder %s14, 0
    %p35 = por %p33, %p34
    %p36 = scmp.ne.s32.totalorder %s22, %s23
    %p37 = scmp.eq.s32.totalorder %s15, 1
    %p38 = por %p36, %p37
    %p40 = scmp.ne.s32.totalorder %s23, %s39
    %p41 = scmp.eq.s32.totalorder %s15, 0
    %p42 = por %p40, %p41
    %s44 = sadd.s32 %s43, 1
    %p47 = scmp.eq.s32.totalorder %s9, 1
    %p48 = scmp.ne.s32.totalorder %s43, %s45
    %p49 = scmp.eq.s32.totalorder %s9, 0
    %p50 = por %p48, %p49
    %p51 = scmp.ne.s32.totalorder %s43, %s45
    %p52 = scmp.eq.s32.totalorder %s14, 1
    %p53 = por %p51, %p52
    %p54 = scmp.ne.s32.totalorder %s45, %s46
    %p55 = scmp.eq.s32.totalorder %s14, 0
    %p56 = por %p54, %p55
    %p57 = scmp.ne.s32.totalorder %s45, %s46
    %p58 = scmp.eq.s32.totalorder %s15, 1
    %p59 = por %p57, %p58
    %p61 = scmp.ne.s32.totalorder %s46, %s60
    %p62 = scmp.eq.s32.totalorder %s15, 0
    %p63 = por %p61, %p62
    %s65 = sadd.s32 %s64, 1
    %p68 = scmp.eq.s32.totalorder %s9, 1
    %p69 = scmp.ne.s32.totalorder %s64, %s66
    %p70 = scmp.eq.s32.totalorder %s9, 0
    %p71 = por %p69, %p70
    %p72 = scmp.ne.s32.totalorder %s64, %s66
    %p73 = scmp.eq.s32.totalorder %s14, 1
    %p74 = por %p72, %p73
    %p75 = scmp.ne.s32.totalorder %s66, %s67
    %p76 = scmp.eq.s32.totalorder %s14, 0
    %p77 = por %p75, %p76
    %p78 = scmp.ne.s32.totalorder %s66, %s67
    %p79 = scmp.eq.s32.totalorder %s15, 1
    %p80 = por %p78, %p79
    %p82 = scmp.ne.s32.totalorder %s67, %s81
    %p83 = scmp.eq.s32.totalorder %s15, 0
    %p84 = por %p82, %p83
    %s85 = ssub.s32 %s9, %s16
    %p86 = scmp.eq.s32.totalorder %s85, 0
    %s88 = sadd.s32 %s87, 1
    %s89 = scalar_select %p86, %s87, %s88
    %p92 = pneg %p86
    %p93 = scmp.eq.s32.totalorder %s9, 1
    %p94 = por %p92, %p93
    %p95 = scmp.ne.s32.totalorder %s87, %s90
    %p96 = scmp.eq.s32.totalorder %s9, 0
    %p97 = por %p95, %p96
    %p98 = scmp.ne.s32.totalorder %s87, %s90
    %p99 = scmp.eq.s32.totalorder %s14, 1
    %p100 = por %p98, %p99
    %p101 = scmp.ne.s32.totalorder %s90, %s91
    %p102 = scmp.eq.s32.totalorder %s14, 0
    %p103 = por %p101, %p102
    %p104 = scmp.ne.s32.totalorder %s90, %s91
    %p105 = scmp.eq.s32.totalorder %s15, 1
    %p106 = por %p104, %p105
    %p108 = scmp.ne.s32.totalorder %s91, %s107
    %p109 = scmp.eq.s32.totalorder %s15, 0
    %p110 = por %p108, %p109
    %p111 = scmp.le.s32.totalorder 1, %s9
    %p112 = scmp.lt.s32.totalorder %s9, 3
    %p113 = pnand %p111, %p112
    %p114 = pneg %p113
    // Predicated region
    $region9: #{crelu_forward.1} parent=5 // pred_check
      _
    $region10: #{crelu_forward.1} parent=5 // pred_check_branch
      %116 = sbr.rel (%p113) target = $region12
    $region11: #{crelu_forward.1} parent=5 // pred_region
      %s117 = ssub.s32 %s9, 1
      // Predicated region
      $region13: #{crelu_forward.1} parent=11 // pred_check
        %p118 = pneg %p56
      $region14: #{crelu_forward.1} parent=11 // pred_check_branch
        %120 = sbr.rel (%p118) target = $region16
      $region15: #{crelu_forward.1} parent=11 // pred_region
        _
      $region16: #{crelu_forward.1} parent=11 // pred_fallthru
        _
      // Predicated region
      $region17: #{crelu_forward.1} parent=11 // pred_check
        %p121 = pneg %p77
      $region18: #{crelu_forward.1} parent=11 // pred_check_branch
        %123 = sbr.rel (%p121) target = $region20
      $region19: #{crelu_forward.1} parent=11 // pred_region
        _
      $region20: #{crelu_forward.1} parent=11 // pred_fallthru
        _
    $region12: #{crelu_forward.1} parent=5 // pred_fallthru
      _
    %p124 = scmp.lt.s32.totalorder %s9, 2
    // Predicated region
    $region21: #{crelu_forward.1} parent=5 // pred_check
      %p125 = pneg %p124
    $region22: #{crelu_forward.1} parent=5 // pred_check_branch
      %127 = sbr.rel (%p125) target = $region24
    $region23: #{crelu_forward.1} parent=5 // pred_region
      // Predicated region
      $region25: #{crelu_forward.1} parent=23 // pred_check
        %p128 = pneg %p29
      $region26: #{crelu_forward.1} parent=23 // pred_check_branch
        %130 = sbr.rel (%p128) target = $region28
      $region27: #{crelu_forward.1} parent=23 // pred_region
        %p131 = scmp.lt.s32.totalorder %s9, 1
        %s132 = scalar_select %p131, %s9, 1
        %s133 = smul.addr %s132, 3
        %s134 = smul.addr %s133, 2
        %s135 = scalar_lea.vmem %s0, %s134
      $region28: #{crelu_forward.1} parent=23 // pred_fallthru
        _
    $region24: #{crelu_forward.1} parent=5 // pred_fallthru
      _
    %p136 = scmp.le.s32.totalorder 1, %s9
    %p137 = scmp.lt.s32.totalorder %s9, 3
    %p138 = pnand %p136, %p137
    %p139 = pneg %p138
    // Predicated region
    $region29: #{crelu_forward.1} parent=5 // pred_check
      _
    $region30: #{crelu_forward.1} parent=5 // pred_check_branch
      %141 = sbr.rel (%p138) target = $region32
    $region31: #{crelu_forward.1} parent=5 // pred_region
      %s142 = ssub.s32 %s9, 1
      %p143 = scmp.lt.s32.totalorder %s14, 1
      %s144 = scalar_select %p143, %s14, 1
      %s145 = smul.addr %s144, 3
      %s146 = smul.addr %s145, 2
      %s147 = scalar_lea.vmem %s0, %s146
      %p148 = pneg %p35
      %p149 = pneg %p32
      %p150 = pneg %p56
      %p151 = pneg %p53
      %p152 = pneg %p77
      %p153 = pneg %p74
      %p154 = pneg %p103
      %p155 = pneg %p100
      %p156 = scmp.lt.s32.totalorder %s14, 1
      %s157 = scalar_select %p156, %s14, 1
      %s158 = smul.addr %s157, 6
      %s159 = smul.addr %s158, 4
      %s160 = scalar_lea.vmem %s3, %s159
      %p161 = scmp.lt.s32.totalorder %s14, 1
      %s162 = scalar_select %p161, %s14, 1
      %s163 = smul.addr %s162, 3
      %s164 = smul.addr %s163, 2
      %s165 = scalar_lea.vmem %s0, %s164
      %p166 = scmp.lt.s32.totalorder %s14, 1
      %s167 = scalar_select %p166, %s14, 1
      %s168 = smul.addr %s167, 6
      %s169 = smul.addr %s168, 4
      %s170 = scalar_lea.vmem %s3, %s169
      %v172 = vld [vmem:[%s165] sm:$0x3f]
      %v173 = vld [vmem:[%s1] sm:$0xf]
      %v175 = vunpack.c.l.b16 %v173
      %v176 = vpack.c.b16 %v175, %v175
      %177 = vrot.lane.b32.xlu0 %v176, 124
      %v178 = vpop.permute.xlu0 %177
      %v180 = vcombine.high %v172, %v172
      %v182 = vunpack.c.l.s4 1983009808
      %v183 = vunpack.c.0.s8 %v182
      %v184 = vlaneseq
      %v185 = vshrl.u32 %v184, 7
      %v186 = vsub.s32 %v183, %v185
      %v187 = vrot.slane %v172, %v186
      %v189 = vunpack.c.l.s4 1983009808
      %v190 = vunpack.c.0.s8 %v189
      %v191 = vlaneseq
      %v192 = vshrl.u32 %v191, 7
      %v193 = vsub.s32 %v190, %v192
      %v194 = vrot.slane %v180, %v193
      %v195 = vcombine.high %v187, %v187
      %196 = vrot.lane.b32.xlu0 %v187, 127
      %v197 = vpop.permute.xlu0 %196
      %198 = vrot.lane.b32.xlu0 %v195, 127
      %v199 = vpop.permute.xlu0 %198
      %200 = vrot.lane.b32.xlu0 %v194, 127
      %v201 = vpop.permute.xlu0 %200
      %vm202 = vcmask 1039360
      %v203 = vsel %vm202, %v197, %v199
      %v204 = vsel %vm202, %v199, %v201
      %vm205 = vcmask 31744
      %v207 = vsel %vm205, %v178, 0
      %vm209 = vcmask 1041408
      %v211 = vsel %vm209, %v203, 0
      %v214 = vsel %vm209, %v204, 0
      %v217 = vsel %vm209, %v201, 0
      %219 = vmatprep.subr.bf16.mxu0 0
      %220 = vmatpush1.bf16.msra.mxu0 0
      %221 = vmatprep.subr.bf16.mxu0 0
      %222 = vmatpush1.bf16.msra.mxu0 0
      %223 = vmatprep.subr.bf16.mxu0 0
      %224 = vmatpush1.bf16.msra.mxu0 0
      %225 = vmatprep.subr.bf16.mxu0 0
      %226 = vmatpush1.bf16.msra.mxu0 0
      %227 = vmatprep.subr.bf16.mxu0 0
      %228 = vmatpush1.bf16.msra.mxu0 0
      %229 = vmatprep.subr.bf16.mxu0 0
      %230 = vmatpush1.bf16.msra.mxu0 0
      %231 = vmatprep.subr.bf16.mxu0 0
      %232 = vmatpush1.bf16.msra.mxu0 0
      %233 = vmatprep.subr.bf16.mxu0 %v214
      %234 = vmatpush1.bf16.msra.mxu0 %v211
      %235 = vmatprep.subr.bf16.mxu0 0
      %236 = vmatpush2.bf16.msra.mxu0 0
      %237 = vmatprep.subr.bf16.mxu0 0
      %238 = vmatpush2.bf16.msra.mxu0 0
      %239 = vmatprep.subr.bf16.mxu0 0
      %240 = vmatpush2.bf16.msra.mxu0 0
      %241 = vmatprep.subr.bf16.mxu0 0
      %242 = vmatpush2.bf16.msra.mxu0 0
      %243 = vmatprep.subr.bf16.mxu0 0
      %244 = vmatpush2.bf16.msra.mxu0 0
      %245 = vmatprep.subr.bf16.mxu0 0
      %246 = vmatpush2.bf16.msra.mxu0 0
      %247 = vmatprep.subr.bf16.mxu0 0
      %248 = vmatpush2.bf16.msra.mxu0 0
      %249 = vmatprep.subr.bf16.mxu0 0
      %250 = vmatpush2.bf16.msra.mxu0 0
      %251 = vmatprep.mubr.bf16.mxu0 0
      %252 = vmatmul.mubr.bf16.gmra.mxu0 %v207
      %v253 = vpop.f32.mrf.mxu0
      %v254 = vadd.f32 0.0, %v253
      %v255 = vpop.f32.mrf.mxu0
      %v256 = vadd.f32 0.0, %v255
      %v257 = vpop.f32.mrf.mxu0
      %v258 = vpop.f32.mrf.mxu0
      %259 = vdwg.mxu0
      %260 = vmatprep.subr.bf16.mxu0 0
      %261 = vmatpush1.bf16.msra.mxu0 0
      %262 = vmatprep.subr.bf16.mxu0 0
      %263 = vmatpush1.bf16.msra.mxu0 0
      %264 = vmatprep.subr.bf16.mxu0 0
      %265 = vmatpush1.bf16.msra.mxu0 0
      %266 = vmatprep.subr.bf16.mxu0 0
      %267 = vmatpush1.bf16.msra.mxu0 0
      %268 = vmatprep.subr.bf16.mxu0 0
      %269 = vmatpush1.bf16.msra.mxu0 0
      %270 = vmatprep.subr.bf16.mxu0 0
      %271 = vmatpush1.bf16.msra.mxu0 0
      %272 = vmatprep.subr.bf16.mxu0 0
      %273 = vmatpush1.bf16.msra.mxu0 0
      %274 = vmatprep.subr.bf16.mxu0 0
      %275 = vmatpush1.bf16.msra.mxu0 %v217
      %276 = vmatprep.subr.bf16.mxu0 0
      %277 = vmatpush2.bf16.msra.mxu0 0
      %278 = vmatprep.subr.bf16.mxu0 0
      %279 = vmatpush2.bf16.msra.mxu0 0
      %280 = vmatprep.subr.bf16.mxu0 0
      %281 = vmatpush2.bf16.msra.mxu0 0
      %282 = vmatprep.subr.bf16.mxu0 0
      %283 = vmatpush2.bf16.msra.mxu0 0
      %284 = vmatprep.subr.bf16.mxu0 0
      %285 = vmatpush2.bf16.msra.mxu0 0
      %286 = vmatprep.subr.bf16.mxu0 0
      %287 = vmatpush2.bf16.msra.mxu0 0
      %288 = vmatprep.subr.bf16.mxu0 0
      %289 = vmatpush2.bf16.msra.mxu0 0
      %290 = vmatprep.subr.bf16.mxu0 0
      %291 = vmatpush2.bf16.msra.mxu0 0
      %292 = vmatprep.mubr.bf16.mxu0 0
      %293 = vmatmul.mubr.bf16.gmra.mxu0 %v207
      %v294 = vpop.f32.mrf.mxu0
      %v295 = vadd.f32 0.0, %v294
      %v296 = vpop.f32.mrf.mxu0
      %v297 = vpop.f32.mrf.mxu0
      %v298 = vpop.f32.mrf.mxu0
      %299 = vdwg.mxu0
      %v301 = vsel %vm205, %v173, 0
      %v304 = vsel %vm209, %v187, 0
      %v307 = vsel %vm209, %v195, 0
      %v310 = vsel %vm209, %v194, 0
      %312 = vmatprep.subr.bf16.mxu0 0
      %313 = vmatpush1.bf16.msra.mxu0 0
      %314 = vmatprep.subr.bf16.mxu0 0
      %315 = vmatpush1.bf16.msra.mxu0 0
      %316 = vmatprep.subr.bf16.mxu0 0
      %317 = vmatpush1.bf16.msra.mxu0 0
      %318 = vmatprep.subr.bf16.mxu0 0
      %319 = vmatpush1.bf16.msra.mxu0 0
      %320 = vmatprep.subr.bf16.mxu0 0
      %321 = vmatpush1.bf16.msra.mxu0 0
      %322 = vmatprep.subr.bf16.mxu0 0
      %323 = vmatpush1.bf16.msra.mxu0 0
      %324 = vmatprep.subr.bf16.mxu0 0
      %325 = vmatpush1.bf16.msra.mxu0 0
      %326 = vmatprep.subr.bf16.mxu0 %v307
      %327 = vmatpush1.bf16.msra.mxu0 %v304
      %328 = vmatprep.subr.bf16.mxu0 0
      %329 = vmatpush2.bf16.msra.mxu0 0
      %330 = vmatprep.subr.bf16.mxu0 0
      %331 = vmatpush2.bf16.msra.mxu0 0
      %332 = vmatprep.subr.bf16.mxu0 0
      %333 = vmatpush2.bf16.msra.mxu0 0
      %334 = vmatprep.subr.bf16.mxu0 0
      %335 = vmatpush2.bf16.msra.mxu0 0
      %336 = vmatprep.subr.bf16.mxu0 0
      %337 = vmatpush2.bf16.msra.mxu0 0
      %338 = vmatprep.subr.bf16.mxu0 0
      %339 = vmatpush2.bf16.msra.mxu0 0
      %340 = vmatprep.subr.bf16.mxu0 0
      %341 = vmatpush2.bf16.msra.mxu0 0
      %342 = vmatprep.subr.bf16.mxu0 0
      %343 = vmatpush2.bf16.msra.mxu0 0
      %344 = vmatprep.mubr.bf16.mxu0 0
      %345 = vmatmul.mubr.bf16.gmra.mxu0 %v301
      %v346 = vpop.f32.mrf.mxu0
      %v347 = vadd.f32 %v254, %v346
      %v348 = vpop.f32.mrf.mxu0
      %v349 = vadd.f32 %v256, %v348
      %v350 = vpop.f32.mrf.mxu0
      %v351 = vpop.f32.mrf.mxu0
      %352 = vdwg.mxu0
      %353 = vmatprep.subr.bf16.mxu0 0
      %354 = vmatpush1.bf16.msra.mxu0 0
      %355 = vmatprep.subr.bf16.mxu0 0
      %356 = vmatpush1.bf16.msra.mxu0 0
      %357 = vmatprep.subr.bf16.mxu0 0
      %358 = vmatpush1.bf16.msra.mxu0 0
      %359 = vmatprep.subr.bf16.mxu0 0
      %360 = vmatpush1.bf16.msra.mxu0 0
      %361 = vmatprep.subr.bf16.mxu0 0
      %362 = vmatpush1.bf16.msra.mxu0 0
      %363 = vmatprep.subr.bf16.mxu0 0
      %364 = vmatpush1.bf16.msra.mxu0 0
      %365 = vmatprep.subr.bf16.mxu0 0
      %366 = vmatpush1.bf16.msra.mxu0 0
      %367 = vmatprep.subr.bf16.mxu0 0
      %368 = vmatpush1.bf16.msra.mxu0 %v310
      %369 = vmatprep.subr.bf16.mxu0 0
      %370 = vmatpush2.bf16.msra.mxu0 0
      %371 = vmatprep.subr.bf16.mxu0 0
      %372 = vmatpush2.bf16.msra.mxu0 0
      %373 = vmatprep.subr.bf16.mxu0 0
      %374 = vmatpush2.bf16.msra.mxu0 0
      %375 = vmatprep.subr.bf16.mxu0 0
      %376 = vmatpush2.bf16.msra.mxu0 0
      %377 = vmatprep.subr.bf16.mxu0 0
      %378 = vmatpush2.bf16.msra.mxu0 0
      %379 = vmatprep.subr.bf16.mxu0 0
      %380 = vmatpush2.bf16.msra.mxu0 0
      %381 = vmatprep.subr.bf16.mxu0 0
      %382 = vmatpush2.bf16.msra.mxu0 0
      %383 = vmatprep.subr.bf16.mxu0 0
      %384 = vmatpush2.bf16.msra.mxu0 0
      %385 = vmatprep.mubr.bf16.mxu0 0
      %386 = vmatmul.mubr.bf16.gmra.mxu0 %v301
      %v387 = vpop.f32.mrf.mxu0
      %v388 = vadd.f32 %v295, %v387
      %v389 = vpop.f32.mrf.mxu0
      %v390 = vpop.f32.mrf.mxu0
      %v391 = vpop.f32.mrf.mxu0
      %392 = vdwg.mxu0
      %393 = vrot.lane.b32.xlu0 %v176, 120
      %v394 = vpop.permute.xlu0 %393
      %395 = vrot.lane.b32.xlu0 %v187, 126
      %v396 = vpop.permute.xlu0 %395
      %397 = vrot.lane.b32.xlu0 %v195, 126
      %v398 = vpop.permute.xlu0 %397
      %399 = vrot.lane.b32.xlu0 %v194, 126
      %v400 = vpop.permute.xlu0 %399
      %vm401 = vcmask 1031168
      %v402 = vsel %vm401, %v396, %v398
      %v403 = vsel %vm401, %v398, %v400
      %v405 = vsel %vm205, %v394, 0
      %v408 = vsel %vm209, %v402, 0
      %v411 = vsel %vm209, %v403, 0
      %v414 = vsel %vm209, %v400, 0
      %416 = vmatprep.subr.bf16.mxu0 0
      %417 = vmatpush1.bf16.msra.mxu0 0
      %418 = vmatprep.subr.bf16.mxu0 0
      %419 = vmatpush1.bf16.msra.mxu0 0
      %420 = vmatprep.subr.bf16.mxu0 0
      %421 = vmatpush1.bf16.msra.mxu0 0
      %422 = vmatprep.subr.bf16.mxu0 0
      %423 = vmatpush1.bf16.msra.mxu0 0
      %424 = vmatprep.subr.bf16.mxu0 0
      %425 = vmatpush1.bf16.msra.mxu0 0
      %426 = vmatprep.subr.bf16.mxu0 0
      %427 = vmatpush1.bf16.msra.mxu0 0
      %428 = vmatprep.subr.bf16.mxu0 0
      %429 = vmatpush1.bf16.msra.mxu0 0
      %430 = vmatprep.subr.bf16.mxu0 %v411
      %431 = vmatpush1.bf16.msra.mxu0 %v408
      %432 = vmatprep.subr.bf16.mxu0 0
      %433 = vmatpush2.bf16.msra.mxu0 0
      %434 = vmatprep.subr.bf16.mxu0 0
      %435 = vmatpush2.bf16.msra.mxu0 0
      %436 = vmatprep.subr.bf16.mxu0 0
      %437 = vmatpush2.bf16.msra.mxu0 0
      %438 = vmatprep.subr.bf16.mxu0 0
      %439 = vmatpush2.bf16.msra.mxu0 0
      %440 = vmatprep.subr.bf16.mxu0 0
      %441 = vmatpush2.bf16.msra.mxu0 0
      %442 = vmatprep.subr.bf16.mxu0 0
      %443 = vmatpush2.bf16.msra.mxu0 0
      %444 = vmatprep.subr.bf16.mxu0 0
      %445 = vmatpush2.bf16.msra.mxu0 0
      %446 = vmatprep.subr.bf16.mxu0 0
      %447 = vmatpush2.bf16.msra.mxu0 0
      %448 = vmatprep.mubr.bf16.mxu0 0
      %449 = vmatmul.mubr.bf16.gmra.mxu0 %v405
      %v450 = vpop.f32.mrf.mxu0
      %v451 = vadd.f32 0.0, %v450
      %v452 = vpop.f32.mrf.mxu0
      %v453 = vadd.f32 0.0, %v452
      %v454 = vpop.f32.mrf.mxu0
      %v455 = vpop.f32.mrf.mxu0
      %456 = vdwg.mxu0
      %457 = vmatprep.subr.bf16.mxu0 0
      %458 = vmatpush1.bf16.msra.mxu0 0
      %459 = vmatprep.subr.bf16.mxu0 0
      %460 = vmatpush1.bf16.msra.mxu0 0
      %461 = vmatprep.subr.bf16.mxu0 0
      %462 = vmatpush1.bf16.msra.mxu0 0
      %463 = vmatprep.subr.bf16.mxu0 0
      %464 = vmatpush1.bf16.msra.mxu0 0
      %465 = vmatprep.subr.bf16.mxu0 0
      %466 = vmatpush1.bf16.msra.mxu0 0
      %467 = vmatprep.subr.bf16.mxu0 0
      %468 = vmatpush1.bf16.msra.mxu0 0
      %469 = vmatprep.subr.bf16.mxu0 0
      %470 = vmatpush1.bf16.msra.mxu0 0
      %471 = vmatprep.subr.bf16.mxu0 0
      %472 = vmatpush1.bf16.msra.mxu0 %v414
      %473 = vmatprep.subr.bf16.mxu0 0
      %474 = vmatpush2.bf16.msra.mxu0 0
      %475 = vmatprep.subr.bf16.mxu0 0
      %476 = vmatpush2.bf16.msra.mxu0 0
      %477 = vmatprep.subr.bf16.mxu0 0
      %478 = vmatpush2.bf16.msra.mxu0 0
      %479 = vmatprep.subr.bf16.mxu0 0
      %480 = vmatpush2.bf16.msra.mxu0 0
      %481 = vmatprep.subr.bf16.mxu0 0
      %482 = vmatpush2.bf16.msra.mxu0 0
      %483 = vmatprep.subr.bf16.mxu0 0
      %484 = vmatpush2.bf16.msra.mxu0 0
      %485 = vmatprep.subr.bf16.mxu0 0
      %486 = vmatpush2.bf16.msra.mxu0 0
      %487 = vmatprep.subr.bf16.mxu0 0
      %488 = vmatpush2.bf16.msra.mxu0 0
      %489 = vmatprep.mubr.bf16.mxu0 0
      %490 = vmatmul.mubr.bf16.gmra.mxu0 %v405
      %v491 = vpop.f32.mrf.mxu0
      %v492 = vadd.f32 0.0, %v491
      %v493 = vpop.f32.mrf.mxu0
      %v494 = vpop.f32.mrf.mxu0
      %v495 = vpop.f32.mrf.mxu0
      %496 = vdwg.mxu0
      %v497 = vadd.f32 %v347, %v451
      %v498 = vadd.f32 %v349, %v453
      %v499 = vadd.f32 %v388, %v492
      %500 = vrot.lane.b32.xlu0 %v176, 116
      %v501 = vpop.permute.xlu0 %500
      %502 = vrot.lane.b32.xlu0 %v187, 110
      %v503 = vpop.permute.xlu0 %502
      %504 = vrot.lane.b32.xlu0 %v195, 110
      %v505 = vpop.permute.xlu0 %504
      %506 = vrot.lane.b32.xlu0 %v194, 110
      %v507 = vpop.permute.xlu0 %506
      %vm508 = vcmask 900096
      %v509 = vsel %vm508, %v503, %v505
      %v510 = vsel %vm508, %v505, %v507
      %v512 = vsel %vm205, %v501, 0
      %v515 = vsel %vm209, %v509, 0
      %v518 = vsel %vm209, %v510, 0
      %v521 = vsel %vm209, %v507, 0
      %523 = vmatprep.subr.bf16.mxu0 0
      %524 = vmatpush1.bf16.msra.mxu0 0
      %525 = vmatprep.subr.bf16.mxu0 0
      %526 = vmatpush1.bf16.msra.mxu0 0
      %527 = vmatprep.subr.bf16.mxu0 0
      %528 = vmatpush1.bf16.msra.mxu0 0
      %529 = vmatprep.subr.bf16.mxu0 0
      %530 = vmatpush1.bf16.msra.mxu0 0
      %531 = vmatprep.subr.bf16.mxu0 0
      %532 = vmatpush1.bf16.msra.mxu0 0
      %533 = vmatprep.subr.bf16.mxu0 0
      %534 = vmatpush1.bf16.msra.mxu0 0
      %535 = vmatprep.subr.bf16.mxu0 0
      %536 = vmatpush1.bf16.msra.mxu0 0
      %537 = vmatprep.subr.bf16.mxu0 %v518
      %538 = vmatpush1.bf16.msra.mxu0 %v515
      %539 = vmatprep.subr.bf16.mxu0 0
      %540 = vmatpush2.bf16.msra.mxu0 0
      %541 = vmatprep.subr.bf16.mxu0 0
      %542 = vmatpush2.bf16.msra.mxu0 0
      %543 = vmatprep.subr.bf16.mxu0 0
      %544 = vmatpush2.bf16.msra.mxu0 0
      %545 = vmatprep.subr.bf16.mxu0 0
      %546 = vmatpush2.bf16.msra.mxu0 0
      %547 = vmatprep.subr.bf16.mxu0 0
      %548 = vmatpush2.bf16.msra.mxu0 0
      %549 = vmatprep.subr.bf16.mxu0 0
      %550 = vmatpush2.bf16.msra.mxu0 0
      %551 = vmatprep.subr.bf16.mxu0 0
      %552 = vmatpush2.bf16.msra.mxu0 0
      %553 = vmatprep.subr.bf16.mxu0 0
      %554 = vmatpush2.bf16.msra.mxu0 0
      %555 = vmatprep.mubr.bf16.mxu0 0
      %556 = vmatmul.mubr.bf16.gmra.mxu0 %v512
      %v557 = vpop.f32.mrf.mxu0
      %v558 = vadd.f32 0.0, %v557
      %v559 = vpop.f32.mrf.mxu0
      %v560 = vadd.f32 0.0, %v559
      %v561 = vpop.f32.mrf.mxu0
      %v562 = vpop.f32.mrf.mxu0
      %563 = vdwg.mxu0
      %564 = vmatprep.subr.bf16.mxu0 0
      %565 = vmatpush1.bf16.msra.mxu0 0
      %566 = vmatprep.subr.bf16.mxu0 0
      %567 = vmatpush1.bf16.msra.mxu0 0
      %568 = vmatprep.subr.bf16.mxu0 0
      %569 = vmatpush1.bf16.msra.mxu0 0
      %570 = vmatprep.subr.bf16.mxu0 0
      %571 = vmatpush1.bf16.msra.mxu0 0
      %572 = vmatprep.subr.bf16.mxu0 0
      %573 = vmatpush1.bf16.msra.mxu0 0
      %574 = vmatprep.subr.bf16.mxu0 0
      %575 = vmatpush1.bf16.msra.mxu0 0
      %576 = vmatprep.subr.bf16.mxu0 0
      %577 = vmatpush1.bf16.msra.mxu0 0
      %578 = vmatprep.subr.bf16.mxu0 0
      %579 = vmatpush1.bf16.msra.mxu0 %v521
      %580 = vmatprep.subr.bf16.mxu0 0
      %581 = vmatpush2.bf16.msra.mxu0 0
      %582 = vmatprep.subr.bf16.mxu0 0
      %583 = vmatpush2.bf16.msra.mxu0 0
      %584 = vmatprep.subr.bf16.mxu0 0
      %585 = vmatpush2.bf16.msra.mxu0 0
      %586 = vmatprep.subr.bf16.mxu0 0
      %587 = vmatpush2.bf16.msra.mxu0 0
      %588 = vmatprep.subr.bf16.mxu0 0
      %589 = vmatpush2.bf16.msra.mxu0 0
      %590 = vmatprep.subr.bf16.mxu0 0
      %591 = vmatpush2.bf16.msra.mxu0 0
      %592 = vmatprep.subr.bf16.mxu0 0
      %593 = vmatpush2.bf16.msra.mxu0 0
      %594 = vmatprep.subr.bf16.mxu0 0
      %595 = vmatpush2.bf16.msra.mxu0 0
      %596 = vmatprep.mubr.bf16.mxu0 0
      %597 = vmatmul.mubr.bf16.gmra.mxu0 %v512
      %v598 = vpop.f32.mrf.mxu0
      %v599 = vadd.f32 0.0, %v598
      %v600 = vpop.f32.mrf.mxu0
      %v601 = vpop.f32.mrf.mxu0
      %v602 = vpop.f32.mrf.mxu0
      %603 = vdwg.mxu0
      %v604 = vadd.f32 %v497, %v558
      %v605 = vadd.f32 %v498, %v560
      %v606 = vadd.f32 %v499, %v599
      %607 = vrot.lane.b32.xlu0 %v176, 112
      %v608 = vpop.permute.xlu0 %607
      %609 = vrot.lane.b32.xlu0 %v187, 109
      %v610 = vpop.permute.xlu0 %609
      %611 = vrot.lane.b32.xlu0 %v195, 109
      %v612 = vpop.permute.xlu0 %611
      %613 = vrot.lane.b32.xlu0 %v194, 109
      %v614 = vpop.permute.xlu0 %613
      %vm615 = vcmask 891904
      %v616 = vsel %vm615, %v610, %v612
      %v617 = vsel %vm615, %v612, %v614
      %v619 = vsel %vm205, %v608, 0
      %v622 = vsel %vm209, %v616, 0
      %v625 = vsel %vm209, %v617, 0
      %v628 = vsel %vm209, %v614, 0
      %630 = vmatprep.subr.bf16.mxu0 0
      %631 = vmatpush1.bf16.msra.mxu0 0
      %632 = vmatprep.subr.bf16.mxu0 0
      %633 = vmatpush1.bf16.msra.mxu0 0
      %634 = vmatprep.subr.bf16.mxu0 0
      %635 = vmatpush1.bf16.msra.mxu0 0
      %636 = vmatprep.subr.bf16.mxu0 0
      %637 = vmatpush1.bf16.msra.mxu0 0
      %638 = vmatprep.subr.bf16.mxu0 0
      %639 = vmatpush1.bf16.msra.mxu0 0
      %640 = vmatprep.subr.bf16.mxu0 0
      %641 = vmatpush1.bf16.msra.mxu0 0
      %642 = vmatprep.subr.bf16.mxu0 0
      %643 = vmatpush1.bf16.msra.mxu0 0
      %644 = vmatprep.subr.bf16.mxu0 %v625
      %645 = vmatpush1.bf16.msra.mxu0 %v622
      %646 = vmatprep.subr.bf16.mxu0 0
      %647 = vmatpush2.bf16.msra.mxu0 0
      %648 = vmatprep.subr.bf16.mxu0 0
      %649 = vmatpush2.bf16.msra.mxu0 0
      %650 = vmatprep.subr.bf16.mxu0 0
      %651 = vmatpush2.bf16.msra.mxu0 0
      %652 = vmatprep.subr.bf16.mxu0 0
      %653 = vmatpush2.bf16.msra.mxu0 0
      %654 = vmatprep.subr.bf16.mxu0 0
      %655 = vmatpush2.bf16.msra.mxu0 0
      %656 = vmatprep.subr.bf16.mxu0 0
      %657 = vmatpush2.bf16.msra.mxu0 0
      %658 = vmatprep.subr.bf16.mxu0 0
      %659 = vmatpush2.bf16.msra.mxu0 0
      %660 = vmatprep.subr.bf16.mxu0 0
      %661 = vmatpush2.bf16.msra.mxu0 0
      %662 = vmatprep.mubr.bf16.mxu0 0
      %663 = vmatmul.mubr.bf16.gmra.mxu0 %v619
      %v664 = vpop.f32.mrf.mxu0
      %v665 = vadd.f32 0.0, %v664
      %v666 = vpop.f32.mrf.mxu0
      %v667 = vadd.f32 0.0, %v666
      %v668 = vpop.f32.mrf.mxu0
      %v669 = vpop.f32.mrf.mxu0
      %670 = vdwg.mxu0
      %671 = vmatprep.subr.bf16.mxu0 0
      %672 = vmatpush1.bf16.msra.mxu0 0
      %673 = vmatprep.subr.bf16.mxu0 0
      %674 = vmatpush1.bf16.msra.mxu0 0
      %675 = vmatprep.subr.bf16.mxu0 0
      %676 = vmatpush1.bf16.msra.mxu0 0
      %677 = vmatprep.subr.bf16.mxu0 0
      %678 = vmatpush1.bf16.msra.mxu0 0
      %679 = vmatprep.subr.bf16.mxu0 0
      %680 = vmatpush1.bf16.msra.mxu0 0
      %681 = vmatprep.subr.bf16.mxu0 0
      %682 = vmatpush1.bf16.msra.mxu0 0
      %683 = vmatprep.subr.bf16.mxu0 0
      %684 = vmatpush1.bf16.msra.mxu0 0
      %685 = vmatprep.subr.bf16.mxu0 0
      %686 = vmatpush1.bf16.msra.mxu0 %v628
      %687 = vmatprep.subr.bf16.mxu0 0
      %688 = vmatpush2.bf16.msra.mxu0 0
      %689 = vmatprep.subr.bf16.mxu0 0
      %690 = vmatpush2.bf16.msra.mxu0 0
      %691 = vmatprep.subr.bf16.mxu0 0
      %692 = vmatpush2.bf16.msra.mxu0 0
      %693 = vmatprep.subr.bf16.mxu0 0
      %694 = vmatpush2.bf16.msra.mxu0 0
      %695 = vmatprep.subr.bf16.mxu0 0
      %696 = vmatpush2.bf16.msra.mxu0 0
      %697 = vmatprep.subr.bf16.mxu0 0
      %698 = vmatpush2.bf16.msra.mxu0 0
      %699 = vmatprep.subr.bf16.mxu0 0
      %700 = vmatpush2.bf16.msra.mxu0 0
      %701 = vmatprep.subr.bf16.mxu0 0
      %702 = vmatpush2.bf16.msra.mxu0 0
      %703 = vmatprep.mubr.bf16.mxu0 0
      %704 = vmatmul.mubr.bf16.gmra.mxu0 %v619
      %v705 = vpop.f32.mrf.mxu0
      %v706 = vadd.f32 0.0, %v705
      %v707 = vpop.f32.mrf.mxu0
      %v708 = vpop.f32.mrf.mxu0
      %v709 = vpop.f32.mrf.mxu0
      %710 = vdwg.mxu0
      %v711 = vadd.f32 %v604, %v665
      %v712 = vadd.f32 %v605, %v667
      %v713 = vadd.f32 %v606, %v706
      %714 = vrot.lane.b32.xlu0 %v176, 108
      %v715 = vpop.permute.xlu0 %714
      %716 = vrot.lane.b32.xlu0 %v187, 108
      %v717 = vpop.permute.xlu0 %716
      %718 = vrot.lane.b32.xlu0 %v195, 108
      %v719 = vpop.permute.xlu0 %718
      %720 = vrot.lane.b32.xlu0 %v194, 108
      %v721 = vpop.permute.xlu0 %720
      %vm722 = vcmask 883712
      %v723 = vsel %vm722, %v717, %v719
      %v724 = vsel %vm722, %v719, %v721
      %v726 = vsel %vm205, %v715, 0
      %v729 = vsel %vm209, %v723, 0
      %v732 = vsel %vm209, %v724, 0
      %v735 = vsel %vm209, %v721, 0
      %737 = vmatprep.subr.bf16.mxu0 0
      %738 = vmatpush1.bf16.msra.mxu0 0
      %739 = vmatprep.subr.bf16.mxu0 0
      %740 = vmatpush1.bf16.msra.mxu0 0
      %741 = vmatprep.subr.bf16.mxu0 0
      %742 = vmatpush1.bf16.msra.mxu0 0
      %743 = vmatprep.subr.bf16.mxu0 0
      %744 = vmatpush1.bf16.msra.mxu0 0
      %745 = vmatprep.subr.bf16.mxu0 0
      %746 = vmatpush1.bf16.msra.mxu0 0
      %747 = vmatprep.subr.bf16.mxu0 0
      %748 = vmatpush1.bf16.msra.mxu0 0
      %749 = vmatprep.subr.bf16.mxu0 0
      %750 = vmatpush1.bf16.msra.mxu0 0
      %751 = vmatprep.subr.bf16.mxu0 %v732
      %752 = vmatpush1.bf16.msra.mxu0 %v729
      %753 = vmatprep.subr.bf16.mxu0 0
      %754 = vmatpush2.bf16.msra.mxu0 0
      %755 = vmatprep.subr.bf16.mxu0 0
      %756 = vmatpush2.bf16.msra.mxu0 0
      %757 = vmatprep.subr.bf16.mxu0 0
      %758 = vmatpush2.bf16.msra.mxu0 0
      %759 = vmatprep.subr.bf16.mxu0 0
      %760 = vmatpush2.bf16.msra.mxu0 0
      %761 = vmatprep.subr.bf16.mxu0 0
      %762 = vmatpush2.bf16.msra.mxu0 0
      %763 = vmatprep.subr.bf16.mxu0 0
      %764 = vmatpush2.bf16.msra.mxu0 0
      %765 = vmatprep.subr.bf16.mxu0 0
      %766 = vmatpush2.bf16.msra.mxu0 0
      %767 = vmatprep.subr.bf16.mxu0 0
      %768 = vmatpush2.bf16.msra.mxu0 0
      %769 = vmatprep.mubr.bf16.mxu0 0
      %770 = vmatmul.mubr.bf16.gmra.mxu0 %v726
      %v771 = vpop.f32.mrf.mxu0
      %v772 = vadd.f32 0.0, %v771
      %v773 = vpop.f32.mrf.mxu0
      %v774 = vadd.f32 0.0, %v773
      %v775 = vpop.f32.mrf.mxu0
      %v776 = vpop.f32.mrf.mxu0
      %777 = vdwg.mxu0
      %778 = vmatprep.subr.bf16.mxu0 0
      %779 = vmatpush1.bf16.msra.mxu0 0
      %780 = vmatprep.subr.bf16.mxu0 0
      %781 = vmatpush1.bf16.msra.mxu0 0
      %782 = vmatprep.subr.bf16.mxu0 0
      %783 = vmatpush1.bf16.msra.mxu0 0
      %784 = vmatprep.subr.bf16.mxu0 0
      %785 = vmatpush1.bf16.msra.mxu0 0
      %786 = vmatprep.subr.bf16.mxu0 0
      %787 = vmatpush1.bf16.msra.mxu0 0
      %788 = vmatprep.subr.bf16.mxu0 0
      %789 = vmatpush1.bf16.msra.mxu0 0
      %790 = vmatprep.subr.bf16.mxu0 0
      %791 = vmatpush1.bf16.msra.mxu0 0
      %792 = vmatprep.subr.bf16.mxu0 0
      %793 = vmatpush1.bf16.msra.mxu0 %v735
      %794 = vmatprep.subr.bf16.mxu0 0
      %795 = vmatpush2.bf16.msra.mxu0 0
      %796 = vmatprep.subr.bf16.mxu0 0
      %797 = vmatpush2.bf16.msra.mxu0 0
      %798 = vmatprep.subr.bf16.mxu0 0
      %799 = vmatpush2.bf16.msra.mxu0 0
      %800 = vmatprep.subr.bf16.mxu0 0
      %801 = vmatpush2.bf16.msra.mxu0 0
      %802 = vmatprep.subr.bf16.mxu0 0
      %803 = vmatpush2.bf16.msra.mxu0 0
      %804 = vmatprep.subr.bf16.mxu0 0
      %805 = vmatpush2.bf16.msra.mxu0 0
      %806 = vmatprep.subr.bf16.mxu0 0
      %807 = vmatpush2.bf16.msra.mxu0 0
      %808 = vmatprep.subr.bf16.mxu0 0
      %809 = vmatpush2.bf16.msra.mxu0 0
      %810 = vmatprep.mubr.bf16.mxu0 0
      %811 = vmatmul.mubr.bf16.gmra.mxu0 %v726
      %v812 = vpop.f32.mrf.mxu0
      %v813 = vadd.f32 0.0, %v812
      %v814 = vpop.f32.mrf.mxu0
      %v815 = vpop.f32.mrf.mxu0
      %v816 = vpop.f32.mrf.mxu0
      %817 = vdwg.mxu0
      %v818 = vadd.f32 %v711, %v772
      %v819 = vadd.f32 %v712, %v774
      %v820 = vadd.f32 %v713, %v813
      %821 = vrot.lane.b32.xlu0 %v176, 104
      %v822 = vpop.permute.xlu0 %821
      %823 = vrot.lane.b32.xlu0 %v187, 92
      %v824 = vpop.permute.xlu0 %823
      %825 = vrot.lane.b32.xlu0 %v195, 92
      %v826 = vpop.permute.xlu0 %825
      %827 = vrot.lane.b32.xlu0 %v194, 92
      %v828 = vpop.permute.xlu0 %827
      %vm829 = vcmask 752640
      %v830 = vsel %vm829, %v824, %v826
      %v831 = vsel %vm829, %v826, %v828
      %v833 = vsel %vm205, %v822, 0
      %v836 = vsel %vm209, %v830, 0
      %v839 = vsel %vm209, %v831, 0
      %v842 = vsel %vm209, %v828, 0
      %844 = vmatprep.subr.bf16.mxu0 0
      %845 = vmatpush1.bf16.msra.mxu0 0
      %846 = vmatprep.subr.bf16.mxu0 0
      %847 = vmatpush1.bf16.msra.mxu0 0
      %848 = vmatprep.subr.bf16.mxu0 0
      %849 = vmatpush1.bf16.msra.mxu0 0
      %850 = vmatprep.subr.bf16.mxu0 0
      %851 = vmatpush1.bf16.msra.mxu0 0
      %852 = vmatprep.subr.bf16.mxu0 0
      %853 = vmatpush1.bf16.msra.mxu0 0
      %854 = vmatprep.subr.bf16.mxu0 0
      %855 = vmatpush1.bf16.msra.mxu0 0
      %856 = vmatprep.subr.bf16.mxu0 0
      %857 = vmatpush1.bf16.msra.mxu0 0
      %858 = vmatprep.subr.bf16.mxu0 %v839
      %859 = vmatpush1.bf16.msra.mxu0 %v836
      %860 = vmatprep.subr.bf16.mxu0 0
      %861 = vmatpush2.bf16.msra.mxu0 0
      %862 = vmatprep.subr.bf16.mxu0 0
      %863 = vmatpush2.bf16.msra.mxu0 0
      %864 = vmatprep.subr.bf16.mxu0 0
      %865 = vmatpush2.bf16.msra.mxu0 0
      %866 = vmatprep.subr.bf16.mxu0 0
      %867 = vmatpush2.bf16.msra.mxu0 0
      %868 = vmatprep.subr.bf16.mxu0 0
      %869 = vmatpush2.bf16.msra.mxu0 0
      %870 = vmatprep.subr.bf16.mxu0 0
      %871 = vmatpush2.bf16.msra.mxu0 0
      %872 = vmatprep.subr.bf16.mxu0 0
      %873 = vmatpush2.bf16.msra.mxu0 0
      %874 = vmatprep.subr.bf16.mxu0 0
      %875 = vmatpush2.bf16.msra.mxu0 0
      %876 = vmatprep.mubr.bf16.mxu0 0
      %877 = vmatmul.mubr.bf16.gmra.mxu0 %v833
      %v878 = vpop.f32.mrf.mxu0
      %v879 = vadd.f32 0.0, %v878
      %v880 = vpop.f32.mrf.mxu0
      %v881 = vadd.f32 0.0, %v880
      %v882 = vpop.f32.mrf.mxu0
      %v883 = vpop.f32.mrf.mxu0
      %884 = vdwg.mxu0
      %885 = vmatprep.subr.bf16.mxu0 0
      %886 = vmatpush1.bf16.msra.mxu0 0
      %887 = vmatprep.subr.bf16.mxu0 0
      %888 = vmatpush1.bf16.msra.mxu0 0
      %889 = vmatprep.subr.bf16.mxu0 0
      %890 = vmatpush1.bf16.msra.mxu0 0
      %891 = vmatprep.subr.bf16.mxu0 0
      %892 = vmatpush1.bf16.msra.mxu0 0
      %893 = vmatprep.subr.bf16.mxu0 0
      %894 = vmatpush1.bf16.msra.mxu0 0
      %895 = vmatprep.subr.bf16.mxu0 0
      %896 = vmatpush1.bf16.msra.mxu0 0
      %897 = vmatprep.subr.bf16.mxu0 0
      %898 = vmatpush1.bf16.msra.mxu0 0
      %899 = vmatprep.subr.bf16.mxu0 0
      %900 = vmatpush1.bf16.msra.mxu0 %v842
      %901 = vmatprep.subr.bf16.mxu0 0
      %902 = vmatpush2.bf16.msra.mxu0 0
      %903 = vmatprep.subr.bf16.mxu0 0
      %904 = vmatpush2.bf16.msra.mxu0 0
      %905 = vmatprep.subr.bf16.mxu0 0
      %906 = vmatpush2.bf16.msra.mxu0 0
      %907 = vmatprep.subr.bf16.mxu0 0
      %908 = vmatpush2.bf16.msra.mxu0 0
      %909 = vmatprep.subr.bf16.mxu0 0
      %910 = vmatpush2.bf16.msra.mxu0 0
      %911 = vmatprep.subr.bf16.mxu0 0
      %912 = vmatpush2.bf16.msra.mxu0 0
      %913 = vmatprep.subr.bf16.mxu0 0
      %914 = vmatpush2.bf16.msra.mxu0 0
      %915 = vmatprep.subr.bf16.mxu0 0
      %916 = vmatpush2.bf16.msra.mxu0 0
      %917 = vmatprep.mubr.bf16.mxu0 0
      %918 = vmatmul.mubr.bf16.gmra.mxu0 %v833
      %v919 = vpop.f32.mrf.mxu0
      %v920 = vadd.f32 0.0, %v919
      %v921 = vpop.f32.mrf.mxu0
      %v922 = vpop.f32.mrf.mxu0
      %v923 = vpop.f32.mrf.mxu0
      %924 = vdwg.mxu0
      %v925 = vadd.f32 %v818, %v879
      %v926 = vadd.f32 %v819, %v881
      %v927 = vadd.f32 %v820, %v920
      %928 = vrot.lane.b32.xlu0 %v176, 100
      %v929 = vpop.permute.xlu0 %928
      %930 = vrot.lane.b32.xlu0 %v187, 91
      %v931 = vpop.permute.xlu0 %930
      %932 = vrot.lane.b32.xlu0 %v195, 91
      %v933 = vpop.permute.xlu0 %932
      %934 = vrot.lane.b32.xlu0 %v194, 91
      %v935 = vpop.permute.xlu0 %934
      %vm936 = vcmask 744448
      %v937 = vsel %vm936, %v931, %v933
      %v938 = vsel %vm936, %v933, %v935
      %v940 = vsel %vm205, %v929, 0
      %v943 = vsel %vm209, %v937, 0
      %v946 = vsel %vm209, %v938, 0
      %v949 = vsel %vm209, %v935, 0
      %951 = vmatprep.subr.bf16.mxu0 0
      %952 = vmatpush1.bf16.msra.mxu0 0
      %953 = vmatprep.subr.bf16.mxu0 0
      %954 = vmatpush1.bf16.msra.mxu0 0
      %955 = vmatprep.subr.bf16.mxu0 0
      %956 = vmatpush1.bf16.msra.mxu0 0
      %957 = vmatprep.subr.bf16.mxu0 0
      %958 = vmatpush1.bf16.msra.mxu0 0
      %959 = vmatprep.subr.bf16.mxu0 0
      %960 = vmatpush1.bf16.msra.mxu0 0
      %961 = vmatprep.subr.bf16.mxu0 0
      %962 = vmatpush1.bf16.msra.mxu0 0
      %963 = vmatprep.subr.bf16.mxu0 0
      %964 = vmatpush1.bf16.msra.mxu0 0
      %965 = vmatprep.subr.bf16.mxu0 %v946
      %966 = vmatpush1.bf16.msra.mxu0 %v943
      %967 = vmatprep.subr.bf16.mxu0 0
      %968 = vmatpush2.bf16.msra.mxu0 0
      %969 = vmatprep.subr.bf16.mxu0 0
      %970 = vmatpush2.bf16.msra.mxu0 0
      %971 = vmatprep.subr.bf16.mxu0 0
      %972 = vmatpush2.bf16.msra.mxu0 0
      %973 = vmatprep.subr.bf16.mxu0 0
      %974 = vmatpush2.bf16.msra.mxu0 0
      %975 = vmatprep.subr.bf16.mxu0 0
      %976 = vmatpush2.bf16.msra.mxu0 0
      %977 = vmatprep.subr.bf16.mxu0 0
      %978 = vmatpush2.bf16.msra.mxu0 0
      %979 = vmatprep.subr.bf16.mxu0 0
      %980 = vmatpush2.bf16.msra.mxu0 0
      %981 = vmatprep.subr.bf16.mxu0 0
      %982 = vmatpush2.bf16.msra.mxu0 0
      %983 = vmatprep.mubr.bf16.mxu0 0
      %984 = vmatmul.mubr.bf16.gmra.mxu0 %v940
      %v985 = vpop.f32.mrf.mxu0
      %v986 = vadd.f32 0.0, %v985
      %v987 = vpop.f32.mrf.mxu0
      %v988 = vadd.f32 0.0, %v987
      %v989 = vpop.f32.mrf.mxu0
      %v990 = vpop.f32.mrf.mxu0
      %991 = vdwg.mxu0
      %992 = vmatprep.subr.bf16.mxu0 0
      %993 = vmatpush1.bf16.msra.mxu0 0
      %994 = vmatprep.subr.bf16.mxu0 0
      %995 = vmatpush1.bf16.msra.mxu0 0
      %996 = vmatprep.subr.bf16.mxu0 0
      %997 = vmatpush1.bf16.msra.mxu0 0
      %998 = vmatprep.subr.bf16.mxu0 0
      %999 = vmatpush1.bf16.msra.mxu0 0
      %1000 = vmatprep.subr.bf16.mxu0 0
      %1001 = vmatpush1.bf16.msra.mxu0 0
      %1002 = vmatprep.subr.bf16.mxu0 0
      %1003 = vmatpush1.bf16.msra.mxu0 0
      %1004 = vmatprep.subr.bf16.mxu0 0
      %1005 = vmatpush1.bf16.msra.mxu0 0
      %1006 = vmatprep.subr.bf16.mxu0 0
      %1007 = vmatpush1.bf16.msra.mxu0 %v949
      %1008 = vmatprep.subr.bf16.mxu0 0
      %1009 = vmatpush2.bf16.msra.mxu0 0
      %1010 = vmatprep.subr.bf16.mxu0 0
      %1011 = vmatpush2.bf16.msra.mxu0 0
      %1012 = vmatprep.subr.bf16.mxu0 0
      %1013 = vmatpush2.bf16.msra.mxu0 0
      %1014 = vmatprep.subr.bf16.mxu0 0
      %1015 = vmatpush2.bf16.msra.mxu0 0
      %1016 = vmatprep.subr.bf16.mxu0 0
      %1017 = vmatpush2.bf16.msra.mxu0 0
      %1018 = vmatprep.subr.bf16.mxu0 0
      %1019 = vmatpush2.bf16.msra.mxu0 0
      %1020 = vmatprep.subr.bf16.mxu0 0
      %1021 = vmatpush2.bf16.msra.mxu0 0
      %1022 = vmatprep.subr.bf16.mxu0 0
      %1023 = vmatpush2.bf16.msra.mxu0 0
      %1024 = vmatprep.mubr.bf16.mxu0 0
      %1025 = vmatmul.mubr.bf16.gmra.mxu0 %v940
      %v1026 = vpop.f32.mrf.mxu0
      %v1027 = vadd.f32 0.0, %v1026
      %v1028 = vpop.f32.mrf.mxu0
      %v1029 = vpop.f32.mrf.mxu0
      %v1030 = vpop.f32.mrf.mxu0
      %1031 = vdwg.mxu0
      %v1032 = vadd.f32 %v925, %v986
      %v1033 = vadd.f32 %v926, %v988
      %v1034 = vadd.f32 %v927, %v1027
      %1035 = vrot.lane.b32.xlu0 %v176, 96
      %v1036 = vpop.permute.xlu0 %1035
      %1037 = vrot.lane.b32.xlu0 %v187, 90
      %v1038 = vpop.permute.xlu0 %1037
      %1039 = vrot.lane.b32.xlu0 %v195, 90
      %v1040 = vpop.permute.xlu0 %1039
      %1041 = vrot.lane.b32.xlu0 %v194, 90
      %v1042 = vpop.permute.xlu0 %1041
      %vm1043 = vcmask 736256
      %v1044 = vsel %vm1043, %v1038, %v1040
      %v1045 = vsel %vm1043, %v1040, %v1042
      %v1047 = vsel %vm205, %v1036, 0
      %v1050 = vsel %vm209, %v1044, 0
      %v1053 = vsel %vm209, %v1045, 0
      %v1056 = vsel %vm209, %v1042, 0
      %1058 = vmatprep.subr.bf16.mxu0 0
      %1059 = vmatpush1.bf16.msra.mxu0 0
      %1060 = vmatprep.subr.bf16.mxu0 0
      %1061 = vmatpush1.bf16.msra.mxu0 0
      %1062 = vmatprep.subr.bf16.mxu0 0
      %1063 = vmatpush1.bf16.msra.mxu0 0
      %1064 = vmatprep.subr.bf16.mxu0 0
      %1065 = vmatpush1.bf16.msra.mxu0 0
      %1066 = vmatprep.subr.bf16.mxu0 0
      %1067 = vmatpush1.bf16.msra.mxu0 0
      %1068 = vmatprep.subr.bf16.mxu0 0
      %1069 = vmatpush1.bf16.msra.mxu0 0
      %1070 = vmatprep.subr.bf16.mxu0 0
      %1071 = vmatpush1.bf16.msra.mxu0 0
      %1072 = vmatprep.subr.bf16.mxu0 %v1053
      %1073 = vmatpush1.bf16.msra.mxu0 %v1050
      %1074 = vmatprep.subr.bf16.mxu0 0
      %1075 = vmatpush2.bf16.msra.mxu0 0
      %1076 = vmatprep.subr.bf16.mxu0 0
      %1077 = vmatpush2.bf16.msra.mxu0 0
      %1078 = vmatprep.subr.bf16.mxu0 0
      %1079 = vmatpush2.bf16.msra.mxu0 0
      %1080 = vmatprep.subr.bf16.mxu0 0
      %1081 = vmatpush2.bf16.msra.mxu0 0
      %1082 = vmatprep.subr.bf16.mxu0 0
      %1083 = vmatpush2.bf16.msra.mxu0 0
      %1084 = vmatprep.subr.bf16.mxu0 0
      %1085 = vmatpush2.bf16.msra.mxu0 0
      %1086 = vmatprep.subr.bf16.mxu0 0
      %1087 = vmatpush2.bf16.msra.mxu0 0
      %1088 = vmatprep.subr.bf16.mxu0 0
      %1089 = vmatpush2.bf16.msra.mxu0 0
      %1090 = vmatprep.mubr.bf16.mxu0 0
      %1091 = vmatmul.mubr.bf16.gmra.mxu0 %v1047
      %v1092 = vpop.f32.mrf.mxu0
      %v1093 = vadd.f32 0.0, %v1092
      %v1094 = vpop.f32.mrf.mxu0
      %v1095 = vadd.f32 0.0, %v1094
      %v1096 = vpop.f32.mrf.mxu0
      %v1097 = vpop.f32.mrf.mxu0
      %1098 = vdwg.mxu0
      %1099 = vmatprep.subr.bf16.mxu0 0
      %1100 = vmatpush1.bf16.msra.mxu0 0
      %1101 = vmatprep.subr.bf16.mxu0 0
      %1102 = vmatpush1.bf16.msra.mxu0 0
      %1103 = vmatprep.subr.bf16.mxu0 0
      %1104 = vmatpush1.bf16.msra.mxu0 0
      %1105 = vmatprep.subr.bf16.mxu0 0
      %1106 = vmatpush1.bf16.msra.mxu0 0
      %1107 = vmatprep.subr.bf16.mxu0 0
      %1108 = vmatpush1.bf16.msra.mxu0 0
      %1109 = vmatprep.subr.bf16.mxu0 0
      %1110 = vmatpush1.bf16.msra.mxu0 0
      %1111 = vmatprep.subr.bf16.mxu0 0
      %1112 = vmatpush1.bf16.msra.mxu0 0
      %1113 = vmatprep.subr.bf16.mxu0 0
      %1114 = vmatpush1.bf16.msra.mxu0 %v1056
      %1115 = vmatprep.subr.bf16.mxu0 0
      %1116 = vmatpush2.bf16.msra.mxu0 0
      %1117 = vmatprep.subr.bf16.mxu0 0
      %1118 = vmatpush2.bf16.msra.mxu0 0
      %1119 = vmatprep.subr.bf16.mxu0 0
      %1120 = vmatpush2.bf16.msra.mxu0 0
      %1121 = vmatprep.subr.bf16.mxu0 0
      %1122 = vmatpush2.bf16.msra.mxu0 0
      %1123 = vmatprep.subr.bf16.mxu0 0
      %1124 = vmatpush2.bf16.msra.mxu0 0
      %1125 = vmatprep.subr.bf16.mxu0 0
      %1126 = vmatpush2.bf16.msra.mxu0 0
      %1127 = vmatprep.subr.bf16.mxu0 0
      %1128 = vmatpush2.bf16.msra.mxu0 0
      %1129 = vmatprep.subr.bf16.mxu0 0
      %1130 = vmatpush2.bf16.msra.mxu0 0
      %1131 = vmatprep.mubr.bf16.mxu0 0
      %1132 = vmatmul.mubr.bf16.gmra.mxu0 %v1047
      %v1133 = vpop.f32.mrf.mxu0
      %v1134 = vadd.f32 0.0, %v1133
      %v1135 = vpop.f32.mrf.mxu0
      %v1136 = vpop.f32.mrf.mxu0
      %v1137 = vpop.f32.mrf.mxu0
      %1138 = vdwg.mxu0
      %v1139 = vadd.f32 %v1032, %v1093
      %v1140 = vadd.f32 %v1033, %v1095
      %v1141 = vadd.f32 %v1034, %v1134
      %v1142 = vld [vmem:[%s2] sm:$0xff]
      %1144 = vset.pattern.permute.xlu0 0
      %1145 = vperm.xlu0 %1144, %v1142
      %v1146 = vpop.permute.xlu0 %1145
      %v1148 = vadd.f32 %v1139, %v1146
      %v1149 = vadd.f32 %v1140, %v1146
      %v1150 = vadd.f32 %v1141, %v1146
      %v1151 = vmax.f32 %v1148, 0.0
      %v1152 = vmax.f32 %v1149, 0.0
      %v1153 = vmax.f32 %v1150, 0.0
      %v1154 = vsub.f32 0.0, %v1148
      %v1155 = vsub.f32 0.0, %v1149
      %v1156 = vsub.f32 0.0, %v1150
      %v1157 = vmax.f32 %v1154, 0.0
      %v1158 = vmax.f32 %v1155, 0.0
      %v1159 = vmax.f32 %v1156, 0.0
      %v1160 = vpack.c.bf16 %v1157, %v1151
      %v1161 = vpack.c.bf16 %v1158, %v1152
      %v1162 = vpack.c.bf16 %v1159, %v1153
      %v1166 = vunpack.c.l.b16 %v1160
      %v1167 = vunpack.c.l.b16 %v1161
      %v1168 = vunpack.c.l.b16 %v1162
      %v1169 = vunpack.c.h.b16 %v1160
      %v1170 = vunpack.c.h.b16 %v1161
      %v1171 = vunpack.c.h.b16 %v1162
      %v1172 = vpack.c.b16 %v1167, %v1166
      %v1173 = vpack.c.b16 %v1168, %v1168
      %v1174 = vpack.c.b16 %v1170, %v1169
      %v1175 = vpack.c.b16 %v1171, %v1171
      %1180 = vst [vmem:[%s170] sm:$0xff] %v1172
      %vm1181 = vcmask 257024
      %1182 = vst.msk [vmem:[%s170 + $0x8] sm:$0xf] %vm1181, %v1173
      %1183 = vst [vmem:[%s170 + $0xc] sm:$0xff] %v1174
      %1184 = vst.msk [vmem:[%s170 + $0x14] sm:$0xf] %vm1181, %v1175
      %p1185 = scmp.lt.s32.totalorder %s14, 1
      %s1186 = scalar_select %p1185, %s14, 1
      %s1187 = smul.addr %s1186, 6
      %s1188 = smul.addr %s1187, 4
      %s1189 = scalar_lea.vmem %s3, %s1188
      // Predicated region
      $region33: #{crelu_forward.1} parent=31 // pred_check
        %p1190 = pneg %p100
      $region34: #{crelu_forward.1} parent=31 // pred_check_branch
        %1192 = sbr.rel (%p1190) target = $region36
      $region35: #{crelu_forward.1} parent=31 // pred_region
        _
      $region36: #{crelu_forward.1} parent=31 // pred_fallthru
        _
    $region32: #{crelu_forward.1} parent=5 // pred_fallthru
      _
    %p1193 = scmp.le.s32.totalorder 2, %s9
    // Predicated region
    $region37: #{crelu_forward.1} parent=5 // pred_check
      %p1194 = pneg %p1193
    $region38: #{crelu_forward.1} parent=5 // pred_check_branch
      %1196 = sbr.rel (%p1194) target = $region40
    $region39: #{crelu_forward.1} parent=5 // pred_region
      %s1197 = ssub.s32 %s9, 2
      // Predicated region
      $region41: #{crelu_forward.1} parent=39 // pred_check
        %p1198 = pneg %p106
      $region42: #{crelu_forward.1} parent=39 // pred_check_branch
        %1200 = sbr.rel (%p1198) target = $region44
      $region43: #{crelu_forward.1} parent=39 // pred_region
        %p1201 = scmp.lt.s32.totalorder %s15, 1
        %s1202 = scalar_select %p1201, %s15, 1
        %s1203 = smul.addr %s1202, 6
        %s1204 = smul.addr %s1203, 4
        %s1205 = scalar_lea.vmem %s3, %s1204
      $region44: #{crelu_forward.1} parent=39 // pred_fallthru
        _
    $region40: #{crelu_forward.1} parent=5 // pred_fallthru
      _
  $region6: #{crelu_forward.1} parent=0 // loop_footer
    %s13 = sadd.s32 1, %s9
  $region7: #{crelu_forward.1} parent=0 // loop_footer_branch
    %8 = sbr.rel target = $region3
  $region8: #{crelu_forward.1} parent=0 // loop_exit
    _

</llo_original>
